<compile_context>
chip_gen: v7x
topology: tpu7x:2x2x1
jax: 0.10.0
libtpu: 0.0.40
codegen_flags: <defaults>
</compile_context>

<pallas_src>
import functools

import jax
import jax.numpy as jnp
import numpy as np
from jax.experimental import pallas as pl
from jax.experimental.pallas import tpu as pltpu


# --------------------------------------------------------------------------
# Kernel
# --------------------------------------------------------------------------
def _conv_bn_relu_kernel(x_ref, w_ref, shift_ref, o_ref, acc_ref, *,
                         kh_sz, th, wo, apply_relu):
    """One (batch, h-tile, cout-tile) grid step.

    x_ref:     (TH_IN * Wo, KW*Cin)  flattened input row-window (with halo)
    w_ref:     (KH, KW*Cin, TC)      BN-scale-folded weights, one Cout tile
    shift_ref: (1, TC)               BN shift (= beta - mean*scale [+ bias*scale])
    o_ref:     (TH * Wo, TC)         flattened output tile (lane-dense)
    acc_ref:   (TH * Wo, TC) f32     VMEM accumulator scratch
    """
    m = th * wo
    # kh = 0 tap: plain assignment -> no zero-init pass over the accumulator.
    acc_ref[...] = jnp.dot(x_ref[0:m, :], w_ref[0],
                           preferred_element_type=jnp.float32)
    # Remaining taps: one fat (M, KW*Cin) x (KW*Cin, TC) matmul each; the LHS
    # is a contiguous leading-dim slice (pure view, no relayout copy).
    for kh in range(1, kh_sz):
        acc_ref[...] += jnp.dot(x_ref[kh * wo:kh * wo + m, :], w_ref[kh],
                                preferred_element_type=jnp.float32)
    y = acc_ref[...] + shift_ref[...]          # BN shift (scale is in weights)
    if apply_relu:
        y = jnp.maximum(y, 0.0)
    o_ref[...] = y.astype(o_ref.dtype)


# --------------------------------------------------------------------------
# Static planning (tile sizes, VMEM limit) — runs in Python, outside jit.
# --------------------------------------------------------------------------
def _device_kind():
    try:
        return jax.devices()[0].device_kind.lower()
    except Exception:
        return ""


def _plan(ho, wo, kh, kwcin, cout, in_itemsize, out_itemsize,
          h_tile, cout_tile):
    kind = _device_kind()

    # Cout tile: 256 matches the 256-wide MXU on v6e/v7x when Cout is deep;
    # keep 128 on v5e (4x128^2 MXU) and for small Cout. Always a multiple of
    # 128 so output stores are lane-dense / unmasked.
    if cout_tile is not None:
        tc = cout_tile
    elif cout >= 256 and "v5" not in kind:
        tc = 256
    else:
        tc = 128

    # Scoped VMEM: v7x has 64 MiB physical -> stay <= 48 MiB; v5e/v6e have
    # 128 MiB -> 64 MiB lets the planner pick large blocks.
    vmem_limit = (48 << 20) if "v7" in kind else (64 << 20)
    budget = int(0.7 * vmem_limit)

    def step_bytes(th):
        th_in = th + kh - 1
        x_blk = th_in * wo * kwcin * in_itemsize
        w_blk = kh * kwcin * tc * in_itemsize
        o_blk = th * wo * tc * out_itemsize
        sh_blk = tc * 4
        acc = th * wo * tc * 4
        # inputs/outputs are double-buffered by the pipeline; acc is single.
        return 2 * (x_blk + w_blk + o_blk + sh_blk) + acc

    if h_tile is not None:
        th = h_tile
    else:
        th = 1
        for cand in range(1, ho + 1):          # largest divisor that fits VMEM
            if ho % cand == 0 and step_bytes(cand) <= budget:
                th = cand
    return tc, th, vmem_limit


# --------------------------------------------------------------------------
# Jitted implementation (all array glue fuses under this jit).
# --------------------------------------------------------------------------
@functools.partial(
    jax.jit,
    static_argnames=("padding", "eps", "relu", "bn", "kh", "kw",
                     "compute_dtype", "th", "tc", "vmem_limit"))
def _basic_conv_impl(x_nchw, weight_oikk, bn_gamma, bn_beta, bn_mean, bn_var,
                     conv_bias, *, padding, eps, relu, bn, kh, kw,
                     compute_dtype, th, tc, vmem_limit):
    n, cin, h, w = x_nchw.shape
    cout = weight_oikk.shape[0]
    ho = h + 2 * padding - kh + 1
    wo = w + 2 * padding - kw + 1
    out_dtype = x_nchw.dtype

    assert ho % th == 0
    n_h = ho // th
    th_in = th + kh - 1
    kwcin = kw * cin
    cout_pad = ((cout + tc - 1) // tc) * tc
    n_c = cout_pad // tc

    # ---- input prep: cast FIRST, then pad / kw-fold / row windows ----
    x_nhwc = jnp.transpose(x_nchw, (0, 2, 3, 1)).astype(compute_dtype)
    x_pad = jnp.pad(x_nhwc, ((0, 0), (padding, padding),
                             (padding, padding), (0, 0)))
    # Fold the KW taps into the contraction dim:
    #   x_kw[n, y, x, kw*Cin + c] = x_pad[n, y, x + kw, c]
    x_kw = jnp.concatenate([x_pad[:, :, k:k + wo, :] for k in range(kw)],
                           axis=-1)                        # (N, Hp, Wo, KW*Cin)
    # Overlapping output-row windows (halo = KH-1 rows), flattened so each
    # per-kh LHS inside the kernel is a contiguous leading-dim slice.
    x_win = jnp.stack([x_kw[:, i * th:i * th + th_in] for i in range(n_h)],
                      axis=1)                      # (N, n_h, TH_IN, Wo, KW*Cin)
    x_prep = x_win.reshape(n, n_h, th_in * wo, kwcin)

    # ---- weights / BN folding ----
    w_hwio = jnp.transpose(weight_oikk, (2, 3, 1, 0)).astype(jnp.float32)
    if bn:
        gamma = bn_gamma if bn_gamma is not None else jnp.ones((cout,), jnp.float32)
        beta = bn_beta if bn_beta is not None else jnp.zeros((cout,), jnp.float32)
        mean = bn_mean if bn_mean is not None else jnp.zeros((cout,), jnp.float32)
        var = bn_var if bn_var is not None else jnp.ones((cout,), jnp.float32)
        scale = (gamma.astype(jnp.float32) /
                 jnp.sqrt(var.astype(jnp.float32) + eps))
        shift = beta.astype(jnp.float32) - mean.astype(jnp.float32) * scale
    else:
        scale = jnp.ones((cout,), jnp.float32)
        shift = jnp.zeros((cout,), jnp.float32)
    if conv_bias is not None:
        shift = shift + scale * conv_bias.astype(jnp.float32)

    # Fold BN scale into the weights -> kernel epilogue is add (+relu) only.
    w_folded = (w_hwio * scale[None, None, None, :]).reshape(kh, kwcin, cout)
    w_folded = jnp.pad(w_folded, ((0, 0), (0, 0), (0, cout_pad - cout)))
    w_folded = w_folded.astype(compute_dtype)
    shift = jnp.pad(shift, (0, cout_pad - cout)).reshape(1, cout_pad)

    kernel = functools.partial(_conv_bn_relu_kernel, kh_sz=kh, th=th, wo=wo,
                               apply_relu=relu)

    out_flat = pl.pallas_call(
        kernel,
        out_shape=jax.ShapeDtypeStruct((n, n_h, th * wo, cout_pad), out_dtype),
        grid_spec=pltpu.PrefetchScalarGridSpec(
            num_scalar_prefetch=0,
            # Cout innermost: the (big) x row-window block index is unchanged
            # across ci steps, so its DMA is not repeated.
            grid=(n, n_h, n_c),
            in_specs=[
                pl.BlockSpec((None, None, th_in * wo, kwcin),
                             lambda b, hi, ci: (b, hi, 0, 0)),
                pl.BlockSpec((kh, kwcin, tc),
                             lambda b, hi, ci: (0, 0, ci)),
                pl.BlockSpec((1, tc), lambda b, hi, ci: (0, ci)),
            ],
            out_specs=pl.BlockSpec((None, None, th * wo, tc),
                                   lambda b, hi, ci: (b, hi, 0, ci)),
            scratch_shapes=[pltpu.VMEM((th * wo, tc), jnp.float32)],
        ),
        compiler_params=pltpu.CompilerParams(
            dimension_semantics=("parallel", "parallel", "parallel"),
            vmem_limit_bytes=vmem_limit),
    )(x_prep, w_folded, shift)

    out_nhwc = out_flat.reshape(n, ho, wo, cout_pad)[..., :cout]
    # TODO(synk): callers that consume NHWC (or Cout a multiple of 128) could
    # skip this slice + NCHW transpose pass over the output.
    return jnp.transpose(out_nhwc, (0, 3, 1, 2))            # NCHW


# --------------------------------------------------------------------------
# Public wrapper: static planning + jitted impl.
# --------------------------------------------------------------------------
def basic_conv_pallas(x_nchw, weight_oikk, bn_gamma=None, bn_beta=None,
                      bn_mean=None, bn_var=None, conv_bias=None, *,
                      stride=1, padding=0, dilation=1, groups=1,
                      relu=True, bn=True, eps=1e-5,
                      compute_dtype=jnp.float32, h_tile=None, cout_tile=None):
    """BasicConv forward. x: (N, Cin, H, W), weight: (Cout, Cin, KH, KW)."""
    if stride != 1 or dilation != 1 or groups != 1:
        raise NotImplementedError(
            "only stride=1, dilation=1, groups=1 are implemented")
    n, cin, h, w = x_nchw.shape
    cout, cin_w, kh, kw = weight_oikk.shape
    assert cin == cin_w
    ho = h + 2 * padding - kh + 1
    wo = w + 2 * padding - kw + 1

    tc, th, vmem_limit = _plan(
        ho, wo, kh, kw * cin, cout,
        in_itemsize=jnp.dtype(compute_dtype).itemsize,
        out_itemsize=jnp.dtype(x_nchw.dtype).itemsize,
        h_tile=h_tile, cout_tile=cout_tile)
    if ho % th != 0:
        raise ValueError(f"h_tile={th} must divide the output height {ho}")

    return _basic_conv_impl(
        x_nchw, weight_oikk, bn_gamma, bn_beta, bn_mean, bn_var, conv_bias,
        padding=padding, eps=eps, relu=relu, bn=bn, kh=kh, kw=kw,
        compute_dtype=compute_dtype, th=th, tc=tc, vmem_limit=vmem_limit)


# --------------------------------------------------------------------------
# Reference + self-test
# --------------------------------------------------------------------------
def _reference(x_nchw, weight_oikk, gamma, beta, mean, var, *, padding,
               eps=1e-5, relu=True, bn=True):
    y = jax.lax.conv_general_dilated(
        x_nchw, weight_oikk, window_strides=(1, 1),
        padding=[(padding, padding), (padding, padding)],
        dimension_numbers=("NCHW", "OIHW", "NCHW"))
    if bn:
        scale = (gamma / jnp.sqrt(var + eps)).reshape(1, -1, 1, 1)
        shift = (beta - mean * gamma / jnp.sqrt(var + eps)).reshape(1, -1, 1, 1)
        y = y * scale + shift
    if relu:
        y = jnp.maximum(y, 0.0)
    return y


if __name__ == "__main__":
    key = jax.random.PRNGKey(0)
    k1, k2, k3, k4, k5, k6 = jax.random.split(key, 6)

    N, CIN, H, W = 2, 4, 16, 16
    COUT, KH, KW = 8, 3, 3
    PAD = 1

    x = jax.random.normal(k1, (N, CIN, H, W), dtype=jnp.float32)
    fan_in = CIN * KH * KW
    weight = jax.random.normal(k2, (COUT, CIN, KH, KW),
                               jnp.float32) / np.sqrt(fan_in)
    gamma = 1.0 + 0.1 * jax.random.normal(k3, (COUT,), jnp.float32)
    beta = 0.1 * jax.random.normal(k4, (COUT,), jnp.float32)
    running_mean = 0.1 * jax.random.normal(k5, (COUT,), jnp.float32)
    running_var = 0.9 + 0.2 * jax.random.uniform(k6, (COUT,), jnp.float32)

    ref = _reference(x, weight, gamma, beta, running_mean, running_var,
                     padding=PAD)

    # 1) f32, multi-tile halo path (h_tile=8 -> grid (2, 2, 1)).
    out = basic_conv_pallas(x, weight, gamma, beta, running_mean, running_var,
                            stride=1, padding=PAD, h_tile=8)
    out = jax.block_until_ready(out)
    assert out.shape == (N, COUT, H, W)
    assert np.allclose(np.asarray(out), np.asarray(ref), atol=1e-4, rtol=1e-4)

    # 2) f32, auto-planned tile (whole image per step at these shapes).
    out_auto = basic_conv_pallas(x, weight, gamma, beta, running_mean,
                                 running_var, stride=1, padding=PAD)
    out_auto = jax.block_until_ready(out_auto)
    assert np.allclose(np.asarray(out_auto), np.asarray(ref),
                       atol=1e-4, rtol=1e-4)

    # 3) bf16 MXU inputs (f32 accumulation), looser tolerance.
    out_bf16 = basic_conv_pallas(x, weight, gamma, beta, running_mean,
                                 running_var, stride=1, padding=PAD,
                                 compute_dtype=jnp.bfloat16, h_tile=8)
    out_bf16 = jax.block_until_ready(out_bf16)
    assert np.allclose(np.asarray(out_bf16), np.asarray(ref),
                       atol=5e-2, rtol=5e-2)

    # 4) bn=False, relu=False path (plain conv).
    ref_plain = _reference(x, weight, gamma, beta, running_mean, running_var,
                           padding=PAD, relu=False, bn=False)
    out_plain = basic_conv_pallas(x, weight, stride=1, padding=PAD,
                                  relu=False, bn=False, h_tile=8)
    out_plain = jax.block_until_ready(out_plain)
    assert np.allclose(np.asarray(out_plain), np.asarray(ref_plain),
                       atol=1e-4, rtol=1e-4)

    print("KERNEL_OK")
</pallas_src>

<mosaic_0001>
module attributes {stable_mosaic.version = 11 : i64} {
  func.func @_conv_bn_relu_kernel(%arg0: i32, %arg1: i32, %arg2: i32, %arg3: memref<1x1x160x12xf32, #tpu.memory_space<vmem>>, %arg4: memref<3x12x128xf32, #tpu.memory_space<vmem>>, %arg5: memref<1x128xf32, #tpu.memory_space<vmem>>, %arg6: memref<1x1x128x128xf32, #tpu.memory_space<vmem>>, %arg7: memref<128x128xf32, #tpu.memory_space<vmem>>) attributes {dimension_semantics = [#tpu.dimension_semantics<parallel>, #tpu.dimension_semantics<parallel>, #tpu.dimension_semantics<parallel>], iteration_bounds = array<i64: 2, 2, 1>, scalar_prefetch = 0 : i64, scratch_operands = 1 : i64, tpu.core_type = #tpu.core_type<tc>, window_params = [{transform_indices = @transform_0, window_bounds = array<i64: 1, 1, 160, 12>}, {transform_indices = @transform_1, window_bounds = array<i64: 3, 12, 128>}, {transform_indices = @transform_2, window_bounds = array<i64: 1, 128>}, {transform_indices = @transform_3, window_bounds = array<i64: 1, 1, 128, 128>}]} {
    %c0 = arith.constant 0 : index
    %c0_0 = arith.constant 0 : index
    %c0_1 = arith.constant 0 : index
    %c0_2 = arith.constant 0 : index
    %0 = vector.load %arg3[%c0, %c0_0, %c0_1, %c0_2] : memref<1x1x160x12xf32, #tpu.memory_space<vmem>>, vector<1x1x128x12xf32>
    %1 = vector.shape_cast %0 : vector<1x1x128x12xf32> to vector<128x12xf32>
    %c0_3 = arith.constant 0 : index
    %c0_4 = arith.constant 0 : index
    %c0_5 = arith.constant 0 : index
    %2 = vector.load %arg4[%c0_3, %c0_4, %c0_5] : memref<3x12x128xf32, #tpu.memory_space<vmem>>, vector<1x12x128xf32>
    %3 = vector.shape_cast %2 : vector<1x12x128xf32> to vector<12x128xf32>
    %cst = arith.constant dense<0.000000e+00> : vector<128x128xf32>
    %4 = tpu.matmul %1, %3, %cst {dimension_numbers = #tpu.dot_dimension_numbers<[1], [0], [0], [1], [0, 0, 1, 1], [], []>} : vector<128x12xf32>, vector<12x128xf32>, vector<128x128xf32> -> vector<128x128xf32>
    %c0_6 = arith.constant 0 : index
    %c0_7 = arith.constant 0 : index
    %5 = vector.load %arg7[%c0_6, %c0_7] : memref<128x128xf32, #tpu.memory_space<vmem>>, vector<128x128xf32>
    tpu.vector_store %arg7[%c0_6, %c0_7], %4 {strides = array<i32>} : memref<128x128xf32, #tpu.memory_space<vmem>>, vector<128x128xf32>,
    %c0_8 = arith.constant 0 : index
    %c0_9 = arith.constant 0 : index
    %6 = vector.load %arg7[%c0_8, %c0_9] : memref<128x128xf32, #tpu.memory_space<vmem>>, vector<128x128xf32>
    %c0_10 = arith.constant 0 : index
    %c0_11 = arith.constant 0 : index
    %c16 = arith.constant 16 : index
    %c0_12 = arith.constant 0 : index
    %7 = vector.load %arg3[%c0_10, %c0_11, %c16, %c0_12] : memref<1x1x160x12xf32, #tpu.memory_space<vmem>>, vector<1x1x128x12xf32>
    %8 = vector.shape_cast %7 : vector<1x1x128x12xf32> to vector<128x12xf32>
    %c1 = arith.constant 1 : index
    %c0_13 = arith.constant 0 : index
    %c0_14 = arith.constant 0 : index
    %9 = vector.load %arg4[%c1, %c0_13, %c0_14] : memref<3x12x128xf32, #tpu.memory_space<vmem>>, vector<1x12x128xf32>
    %10 = vector.shape_cast %9 : vector<1x12x128xf32> to vector<12x128xf32>
    %cst_15 = arith.constant dense<0.000000e+00> : vector<128x128xf32>
    %11 = tpu.matmul %8, %10, %cst_15 {dimension_numbers = #tpu.dot_dimension_numbers<[1], [0], [0], [1], [0, 0, 1, 1], [], []>} : vector<128x12xf32>, vector<12x128xf32>, vector<128x128xf32> -> vector<128x128xf32>
    %12 = arith.addf %6, %11 : vector<128x128xf32>
    %c0_16 = arith.constant 0 : index
    %c0_17 = arith.constant 0 : index
    %13 = vector.load %arg7[%c0_16, %c0_17] : memref<128x128xf32, #tpu.memory_space<vmem>>, vector<128x128xf32>
    tpu.vector_store %arg7[%c0_16, %c0_17], %12 {strides = array<i32>} : memref<128x128xf32, #tpu.memory_space<vmem>>, vector<128x128xf32>,
    %c0_18 = arith.constant 0 : index
    %c0_19 = arith.constant 0 : index
    %14 = vector.load %arg7[%c0_18, %c0_19] : memref<128x128xf32, #tpu.memory_space<vmem>>, vector<128x128xf32>
    %c0_20 = arith.constant 0 : index
    %c0_21 = arith.constant 0 : index
    %c32 = arith.constant 32 : index
    %c0_22 = arith.constant 0 : index
    %15 = vector.load %arg3[%c0_20, %c0_21, %c32, %c0_22] : memref<1x1x160x12xf32, #tpu.memory_space<vmem>>, vector<1x1x128x12xf32>
    %16 = vector.shape_cast %15 : vector<1x1x128x12xf32> to vector<128x12xf32>
    %c2 = arith.constant 2 : index
    %c0_23 = arith.constant 0 : index
    %c0_24 = arith.constant 0 : index
    %17 = vector.load %arg4[%c2, %c0_23, %c0_24] : memref<3x12x128xf32, #tpu.memory_space<vmem>>, vector<1x12x128xf32>
    %18 = vector.shape_cast %17 : vector<1x12x128xf32> to vector<12x128xf32>
    %cst_25 = arith.constant dense<0.000000e+00> : vector<128x128xf32>
    %19 = tpu.matmul %16, %18, %cst_25 {dimension_numbers = #tpu.dot_dimension_numbers<[1], [0], [0], [1], [0, 0, 1, 1], [], []>} : vector<128x12xf32>, vector<12x128xf32>, vector<128x128xf32> -> vector<128x128xf32>
    %20 = arith.addf %14, %19 : vector<128x128xf32>
    %c0_26 = arith.constant 0 : index
    %c0_27 = arith.constant 0 : index
    %21 = vector.load %arg7[%c0_26, %c0_27] : memref<128x128xf32, #tpu.memory_space<vmem>>, vector<128x128xf32>
    tpu.vector_store %arg7[%c0_26, %c0_27], %20 {strides = array<i32>} : memref<128x128xf32, #tpu.memory_space<vmem>>, vector<128x128xf32>,
    %c0_28 = arith.constant 0 : index
    %c0_29 = arith.constant 0 : index
    %22 = vector.load %arg7[%c0_28, %c0_29] : memref<128x128xf32, #tpu.memory_space<vmem>>, vector<128x128xf32>
    %c0_30 = arith.constant 0 : index
    %c0_31 = arith.constant 0 : index
    %23 = vector.load %arg5[%c0_30, %c0_31] : memref<1x128xf32, #tpu.memory_space<vmem>>, vector<1x128xf32>
    %24 = vector.broadcast %23 : vector<1x128xf32> to vector<128x128xf32>
    %25 = arith.addf %22, %24 : vector<128x128xf32>
    %cst_32 = arith.constant 0.000000e+00 : f32
    %26 = vector.broadcast %cst_32 : f32 to vector<128x128xf32>
    %27 = arith.maximumf %25, %26 : vector<128x128xf32>
    %c0_33 = arith.constant 0 : index
    %c0_34 = arith.constant 0 : index
    %c0_35 = arith.constant 0 : index
    %c0_36 = arith.constant 0 : index
    %28 = vector.load %arg6[%c0_33, %c0_34, %c0_35, %c0_36] : memref<1x1x128x128xf32, #tpu.memory_space<vmem>>, vector<1x1x128x128xf32>
    %29 = vector.shape_cast %28 : vector<1x1x128x128xf32> to vector<128x128xf32>
    %30 = vector.shape_cast %27 : vector<128x128xf32> to vector<1x1x128x128xf32>
    tpu.vector_store %arg6[%c0_33, %c0_34, %c0_35, %c0_36], %30 {strides = array<i32>} : memref<1x1x128x128xf32, #tpu.memory_space<vmem>>, vector<1x1x128x128xf32>,
    return
  }
  func.func @transform_0(%arg0: i32, %arg1: i32, %arg2: i32) -> (i32, i32, i32, i32) {
    %c0_i32 = arith.constant 0 : i32
    %c0_i32_0 = arith.constant 0 : i32
    %c0_i32_1 = arith.constant 0 : i32
    return %arg0, %arg1, %c0_i32, %c0_i32_0 : i32, i32, i32, i32
  }
  func.func @transform_1(%arg0: i32, %arg1: i32, %arg2: i32) -> (i32, i32, i32) {
    %c0_i32 = arith.constant 0 : i32
    %c0_i32_0 = arith.constant 0 : i32
    %c0_i32_1 = arith.constant 0 : i32
    return %c0_i32, %c0_i32_0, %arg2 : i32, i32, i32
  }
  func.func @transform_2(%arg0: i32, %arg1: i32, %arg2: i32) -> (i32, i32) {
    %c0_i32 = arith.constant 0 : i32
    %c0_i32_0 = arith.constant 0 : i32
    return %c0_i32, %arg2 : i32, i32
  }
  func.func @transform_3(%arg0: i32, %arg1: i32, %arg2: i32) -> (i32, i32, i32, i32) {
    %c0_i32 = arith.constant 0 : i32
    %c0_i32_0 = arith.constant 0 : i32
    return %arg0, %arg1, %c0_i32, %arg2 : i32, i32, i32, i32
  }
}

</mosaic_0001>

<llo_original>
// kernel: _basic_conv_impl.1
$region0: #{_basic_conv_impl.1}
  #allocation0 [shape = 'u32[]', space=smem, size = 0x4, offset = 0x4, fixed_abs, tag = 'smem constant byte address 0x4 - core index']
  #allocation1 [shape = 'u32[144,128]{1,0:T(1,128)}', space=vmem, size = 0x12000, scoped, tag = 'internal scratch']
  #allocation2 [shape = 'f32[128,128]{1,0:T(8,128)}', space=vmem, size = 0x10000, scoped, tag = 'scratch operand']
  %s0 = inlined_call_operand.hbm [shape: f32[2,2,160,12], index: 0, kind: input, shape index: {}]
  %s1 = inlined_call_operand.hbm [shape: f32[3,12,128], index: 1, kind: input, shape index: {}]
  %s2 = inlined_call_operand.hbm [shape: f32[1,128], index: 2, kind: input, shape index: {}]
  %s3 = inlined_call_operand.hbm [shape: f32[2,2,128,128], index: 3, kind: output, shape index: {}]
  %s4 = sld [smem:[#allocation0]]
  $region57: #{_basic_conv_impl.1} parent=0
    _
  %s6 = ssub.s32 1, %s4
  %s7 = scalar_select 0, %s6, %s4
  $region1: #{_basic_conv_impl.1} parent=0
    #allocation3 [shape = 'u8[163840]{0}', space=vmem, size = 0x28000, scoped, tag = 'input window, operand 0']
    #allocation4 [shape = 's32[2]{0}', space=sflag, size = 0x8, scoped, tag = 'scoped memory for _basic_conv_impl.1']
    #allocation5 [shape = 's32[2]{0}', space=sflag, size = 0x8, scoped, tag = 'scoped memory for _basic_conv_impl.1']
    #allocation6 [shape = 'u8[24576]{0}', space=vmem, size = 0x6000, scoped, tag = 'input window, operand 1, single buffered']
    #allocation7 [shape = 's32[1]{0}', space=sflag, size = 0x4, scoped, tag = 'scoped memory for _basic_conv_impl.1']
    #allocation8 [shape = 'u8[512]{0}', space=vmem, size = 0x400, scoped, tag = 'input window, operand 2, single buffered']
    #allocation9 [shape = 'u8[131072]{0}', space=vmem, size = 0x20000, scoped, tag = 'output window, operand 0']
    %8 = vsyncpa [#allocation4], 0
    %s9 = scalar_lea.sflag [#allocation4], 1
    %10 = vsyncpa %s9, 0
    %11 = vsyncpa [#allocation7], 0
    %12 = vsyncpa [#allocation5], 0
    %s13 = scalar_lea.sflag [#allocation5], 1
    %14 = vsyncpa %s13, 0
    loop: start=0, step=1, limit=6
    $region2: #{_basic_conv_impl.1} parent=1 // loop_pre_header
      _
    $region3: #{_basic_conv_impl.1} parent=1 // loop_header
      %s16 = sphi 0, %s20
      %p17 = scmp.ge.s32.totalorder %s16, 6
      %s23 = sphi 0, %s42
      %s24 = sphi 0, %s38
      %s25 = sphi 0, %s34
      %s26 = sphi 0, %s23
      %s27 = sphi 0, %s24
      %s28 = sphi 0, %s25
      %s29 = sphi 0, %s26
      %s30 = sphi 0, %s27
      %s31 = sphi 0, %s28
      %s47 = sphi 0, %s49
      %s50 = sphi 0, %s47
      %s51 = sphi 0, %s50
      %s67 = sphi 0, %s51
      %s73 = sphi 0, %s75
      %s76 = sphi 0, %s73
      %s77 = sphi 0, %s76
      %s93 = sphi 0, %s77
      %s99 = sphi 0, %s101
      %s102 = sphi 0, %s99
      %s103 = sphi 0, %s102
      %s119 = sphi 0, %s103
      %s129 = sphi 0, %s131
      %s132 = sphi 0, %s129
      %s133 = sphi 0, %s132
      %s149 = sphi 0, %s133
    $region4: #{_basic_conv_impl.1} parent=1 // loop_header_branch
      %19 = sbr.rel (%p17) target = $region8
    $region5: #{_basic_conv_impl.1} parent=1 // loop_body
      %s21 = ssub.s32 %s16, 1
      %s22 = ssub.s32 %s16, 2
      %s32 = sadd.s32 1, %s25
      %p33 = scmp.ge.s32.totalorder %s32, 1
      %s34 = scalar_select %p33, 0, %s32
      %s35 = sadd.s32 1, %s24
      %s36 = scalar_select %p33, %s35, %s24
      %p37 = scmp.ge.s32.totalorder %s36, 2
      %s38 = scalar_select %p37, 0, %s36
      %s39 = sadd.s32 1, %s23
      %s40 = scalar_select %p37, %s39, %s23
      %p41 = scmp.ge.s32.totalorder %s40, 2
      %s42 = scalar_select %p41, 0, %s40
      %s43 = ssub.s32 %s23, %s42
      %s44 = ssub.s32 %s24, %s38
      %s45 = sor.u32 %s43, %s44
      %p46 = scmp.eq.s32.totalorder %s45, 0
      %s48 = sadd.s32 %s47, 1
      %s49 = scalar_select %p46, %s47, %s48
      %p52 = pneg %p46
      %p53 = scmp.eq.s32.totalorder %s16, 3
      %p54 = por %p52, %p53
      %p55 = scmp.ne.s32.totalorder %s47, %s50
      %p56 = scmp.eq.s32.totalorder %s16, 0
      %p57 = por %p55, %p56
      %p58 = scmp.ne.s32.totalorder %s47, %s50
      %p59 = scmp.eq.s32.totalorder %s21, 3
      %p60 = por %p58, %p59
      %p61 = scmp.ne.s32.totalorder %s50, %s51
      %p62 = scmp.eq.s32.totalorder %s21, 0
      %p63 = por %p61, %p62
      %p64 = scmp.ne.s32.totalorder %s50, %s51
      %p65 = scmp.eq.s32.totalorder %s22, 3
      %p66 = por %p64, %p65
      %p68 = scmp.ne.s32.totalorder %s51, %s67
      %p69 = scmp.eq.s32.totalorder %s22, 0
      %p70 = por %p68, %p69
      %s71 = ssub.s32 %s25, %s34
      %p72 = scmp.eq.s32.totalorder %s71, 0
      %s74 = sadd.s32 %s73, 1
      %s75 = scalar_select %p72, %s73, %s74
      %p78 = pneg %p72
      %p79 = scmp.eq.s32.totalorder %s16, 3
      %p80 = por %p78, %p79
      %p81 = scmp.ne.s32.totalorder %s73, %s76
      %p82 = scmp.eq.s32.totalorder %s16, 0
      %p83 = por %p81, %p82
      %p84 = scmp.ne.s32.totalorder %s73, %s76
      %p85 = scmp.eq.s32.totalorder %s21, 3
      %p86 = por %p84, %p85
      %p87 = scmp.ne.s32.totalorder %s76, %s77
      %p88 = scmp.eq.s32.totalorder %s21, 0
      %p89 = por %p87, %p88
      %p90 = scmp.ne.s32.totalorder %s76, %s77
      %p91 = scmp.eq.s32.totalorder %s22, 3
      %p92 = por %p90, %p91
      %p94 = scmp.ne.s32.totalorder %s77, %s93
      %p95 = scmp.eq.s32.totalorder %s22, 0
      %p96 = por %p94, %p95
      %s97 = ssub.s32 %s25, %s34
      %p98 = scmp.eq.s32.totalorder %s97, 0
      %s100 = sadd.s32 %s99, 1
      %s101 = scalar_select %p98, %s99, %s100
      %p104 = pneg %p98
      %p105 = scmp.eq.s32.totalorder %s16, 3
      %p106 = por %p104, %p105
      %p107 = scmp.ne.s32.totalorder %s99, %s102
      %p108 = scmp.eq.s32.totalorder %s16, 0
      %p109 = por %p107, %p108
      %p110 = scmp.ne.s32.totalorder %s99, %s102
      %p111 = scmp.eq.s32.totalorder %s21, 3
      %p112 = por %p110, %p111
      %p113 = scmp.ne.s32.totalorder %s102, %s103
      %p114 = scmp.eq.s32.totalorder %s21, 0
      %p115 = por %p113, %p114
      %p116 = scmp.ne.s32.totalorder %s102, %s103
      %p117 = scmp.eq.s32.totalorder %s22, 3
      %p118 = por %p116, %p117
      %p120 = scmp.ne.s32.totalorder %s103, %s119
      %p121 = scmp.eq.s32.totalorder %s22, 0
      %p122 = por %p120, %p121
      %s123 = ssub.s32 %s23, %s42
      %s124 = ssub.s32 %s24, %s38
      %s125 = sor.u32 %s123, %s124
      %s126 = ssub.s32 %s25, %s34
      %s127 = sor.u32 %s125, %s126
      %p128 = scmp.eq.s32.totalorder %s127, 0
      %s130 = sadd.s32 %s129, 1
      %s131 = scalar_select %p128, %s129, %s130
      %p134 = pneg %p128
      %p135 = scmp.eq.s32.totalorder %s16, 3
      %p136 = por %p134, %p135
      %p137 = scmp.ne.s32.totalorder %s129, %s132
      %p138 = scmp.eq.s32.totalorder %s16, 0
      %p139 = por %p137, %p138
      %p140 = scmp.ne.s32.totalorder %s129, %s132
      %p141 = scmp.eq.s32.totalorder %s21, 3
      %p142 = por %p140, %p141
      %p143 = scmp.ne.s32.totalorder %s132, %s133
      %p144 = scmp.eq.s32.totalorder %s21, 0
      %p145 = por %p143, %p144
      %p146 = scmp.ne.s32.totalorder %s132, %s133
      %p147 = scmp.eq.s32.totalorder %s22, 3
      %p148 = por %p146, %p147
      %p150 = scmp.ne.s32.totalorder %s133, %s149
      %p151 = scmp.eq.s32.totalorder %s22, 0
      %p152 = por %p150, %p151
      %p153 = scmp.le.s32.totalorder 1, %s16
      %p154 = scmp.lt.s32.totalorder %s16, 5
      %p155 = pnand %p153, %p154
      %p156 = pneg %p155
      // Predicated region
      $region9: #{_basic_conv_impl.1} parent=5 // pred_check
        _
      $region10: #{_basic_conv_impl.1} parent=5 // pred_check_branch
        %158 = sbr.rel (%p155) target = $region12
      $region11: #{_basic_conv_impl.1} parent=5 // pred_region
        %s159 = ssub.s32 %s16, 1
        // Predicated region
        $region13: #{_basic_conv_impl.1} parent=11 // pred_check
          %p160 = pneg %p89
        $region14: #{_basic_conv_impl.1} parent=11 // pred_check_branch
          %162 = sbr.rel (%p160) target = $region16
        $region15: #{_basic_conv_impl.1} parent=11 // pred_region
          %s164 = ssub.s32 768, 768
          %165 = vsyncadd [#allocation7], %s164
          %s166 = smul.addr %s28, 128
          %s167 = scalar_lea.hbm %s1, %s166
          %s168 = sshll.u32 [#allocation6], 4
          %s169 = int_to_ptr.vmem [resolvable:$true] %s168
          %174 = dma.hbm_to_vmem [thread:$0]  %s167, 768, %s169, [#allocation7], 128, 128, 8
        $region16: #{_basic_conv_impl.1} parent=11 // pred_fallthru
          _
        // Predicated region
        $region17: #{_basic_conv_impl.1} parent=11 // pred_check
          %p175 = pneg %p115
        $region18: #{_basic_conv_impl.1} parent=11 // pred_check_branch
          %177 = sbr.rel (%p175) target = $region20
        $region19: #{_basic_conv_impl.1} parent=11 // pred_region
          %s179 = ssub.s32 16, 16
          %180 = vsyncadd [#allocation7], %s179
          %s181 = smul.addr %s28, 16
          %s182 = scalar_lea.hbm %s2, %s181
          %s184 = sshll.u32 [#allocation8], 4
          %s185 = int_to_ptr.vmem [resolvable:$true] %s184
          %187 = dma.hbm_to_vmem [thread:$0]  %s182, 16, %s185, [#allocation7]
        $region20: #{_basic_conv_impl.1} parent=11 // pred_fallthru
          _
      $region12: #{_basic_conv_impl.1} parent=5 // pred_fallthru
        _
      %p188 = scmp.lt.s32.totalorder %s16, 4
      // Predicated region
      $region21: #{_basic_conv_impl.1} parent=5 // pred_check
        %p189 = pneg %p188
      $region22: #{_basic_conv_impl.1} parent=5 // pred_check_branch
        %191 = sbr.rel (%p189) target = $region24
      $region23: #{_basic_conv_impl.1} parent=5 // pred_region
        // Predicated region
        $region25: #{_basic_conv_impl.1} parent=23 // pred_check
          %p192 = pneg %p57
        $region26: #{_basic_conv_impl.1} parent=23 // pred_check_branch
          %194 = sbr.rel (%p192) target = $region28
        $region27: #{_basic_conv_impl.1} parent=23 // pred_region
          %s195 = sand.u32 %s47, 1
          %s196 = scalar_lea.sflag [#allocation4], %s195
          %s197 = sand.u32 %s47, 1
          %s198 = smul.addr %s197, 160
          %s199 = scalar_lea.vmem [#allocation3], %s198
          %s201 = ssub.s32 2560, 2560
          %202 = vsyncadd %s196, %s201
          %s203 = smul.addr %s24, 20
          %s204 = smul.addr %s23, 40
          %s205 = sadd.s32 %s203, %s204
          %s206 = smul.addr %s205, 128
          %s207 = scalar_lea.hbm %s0, %s206
          %s208 = sshll.u32 %s199, 4
          %s209 = int_to_ptr.vmem [resolvable:$true] %s208
          %214 = dma.hbm_to_vmem [thread:$0]  %s207, 2560, %s209, %s196, 128, 128, 8
        $region28: #{_basic_conv_impl.1} parent=23 // pred_fallthru
          _
      $region24: #{_basic_conv_impl.1} parent=5 // pred_fallthru
        _
      %p215 = scmp.le.s32.totalorder 1, %s16
      %p216 = scmp.lt.s32.totalorder %s16, 5
      %p217 = pnand %p215, %p216
      %p218 = pneg %p217
      // Predicated region
      $region29: #{_basic_conv_impl.1} parent=5 // pred_check
        _
      $region30: #{_basic_conv_impl.1} parent=5 // pred_check_branch
        %220 = sbr.rel (%p217) target = $region32
      $region31: #{_basic_conv_impl.1} parent=5 // pred_region
        %s221 = ssub.s32 %s16, 1
        %s222 = sand.u32 %s50, 1
        %s223 = scalar_lea.sflag [#allocation4], %s222
        %s224 = sand.u32 %s50, 1
        %s225 = smul.addr %s224, 160
        %s226 = scalar_lea.vmem [#allocation3], %s225
        // Predicated region
        $region33: #{_basic_conv_impl.1} parent=31 // pred_check
          %p227 = pneg %p63
        $region34: #{_basic_conv_impl.1} parent=31 // pred_check_branch
          %229 = sbr.rel (%p227) target = $region36
        $region35: #{_basic_conv_impl.1} parent=31 // pred_region
          %230 = dma.done %s223, 2560
        $region36: #{_basic_conv_impl.1} parent=31 // pred_fallthru
          _
        // Predicated region
        $region37: #{_basic_conv_impl.1} parent=31 // pred_check
          %p231 = pneg %p89
        $region38: #{_basic_conv_impl.1} parent=31 // pred_check_branch
          %233 = sbr.rel (%p231) target = $region40
        $region39: #{_basic_conv_impl.1} parent=31 // pred_region
          %234 = dma.done [#allocation7], 768
        $region40: #{_basic_conv_impl.1} parent=31 // pred_fallthru
          _
        // Predicated region
        $region41: #{_basic_conv_impl.1} parent=31 // pred_check
          %p235 = pneg %p115
        $region42: #{_basic_conv_impl.1} parent=31 // pred_check_branch
          %237 = sbr.rel (%p235) target = $region44
        $region43: #{_basic_conv_impl.1} parent=31 // pred_region
          %238 = dma.done [#allocation7], 16
        $region44: #{_basic_conv_impl.1} parent=31 // pred_fallthru
          _
        %s239 = sand.u32 %s50, 1
        %s240 = scalar_lea.sflag [#allocation4], %s239
        %s241 = sand.u32 %s50, 1
        %s242 = smul.addr %s241, 160
        %s243 = scalar_lea.vmem [#allocation3], %s242
        %p244 = pneg %p63
        %p245 = pneg %p60
        %p246 = pneg %p89
        %p247 = pneg %p86
        %p248 = pneg %p115
        %p249 = pneg %p112
        %p250 = pneg %p145
        %p251 = pneg %p142
        %s252 = sand.u32 %s132, 1
        %s253 = scalar_lea.sflag [#allocation5], %s252
        %s254 = sand.u32 %s132, 1
        %s255 = smul.addr %s254, 128
        %s256 = scalar_lea.vmem [#allocation9], %s255
        %v257 = vld [vmem:[%s226] sm:$0xff]
        %v258 = vld [vmem:[%s226 + $0x8] sm:$0xff]
        %v259 = vld [vmem:[%s226 + $0x10] sm:$0xff]
        %v260 = vld [vmem:[%s226 + $0x18] sm:$0xff]
        %v261 = vld [vmem:[%s226 + $0x20] sm:$0xff]
        %v262 = vld [vmem:[%s226 + $0x28] sm:$0xff]
        %v263 = vld [vmem:[%s226 + $0x30] sm:$0xff]
        %v264 = vld [vmem:[%s226 + $0x38] sm:$0xff]
        %v265 = vld [vmem:[%s226 + $0x40] sm:$0xff]
        %v266 = vld [vmem:[%s226 + $0x48] sm:$0xff]
        %v267 = vld [vmem:[%s226 + $0x50] sm:$0xff]
        %v268 = vld [vmem:[%s226 + $0x58] sm:$0xff]
        %v269 = vld [vmem:[%s226 + $0x60] sm:$0xff]
        %v270 = vld [vmem:[%s226 + $0x68] sm:$0xff]
        %v271 = vld [vmem:[%s226 + $0x70] sm:$0xff]
        %v272 = vld [vmem:[%s226 + $0x78] sm:$0xff]
        %v273 = vld [vmem:[#allocation6] sm:$0xff]
        %v274 = vld [vmem:[#allocation6 + $0x8] sm:$0xf]
        %vm275 = vcmask 97280
        %v277 = vsel %vm275, %v257, 0
        %v280 = vsel %vm275, %v258, 0
        %v283 = vsel %vm275, %v259, 0
        %v286 = vsel %vm275, %v260, 0
        %v289 = vsel %vm275, %v261, 0
        %v292 = vsel %vm275, %v262, 0
        %v295 = vsel %vm275, %v263, 0
        %v298 = vsel %vm275, %v264, 0
        %v301 = vsel %vm275, %v265, 0
        %v304 = vsel %vm275, %v266, 0
        %v307 = vsel %vm275, %v267, 0
        %v310 = vsel %vm275, %v268, 0
        %v313 = vsel %vm275, %v269, 0
        %v316 = vsel %vm275, %v270, 0
        %v319 = vsel %vm275, %v271, 0
        %v322 = vsel %vm275, %v272, 0
        %vm324 = vcmask 1043456
        %v326 = vsel %vm324, %v274, 0
        %328 = vmatprep.subr.mxu0 0.0
        %329 = vmatpush1.msra.mxu0 %v273
        %330 = vmatprep.subr.mxu0 0.0
        %331 = vmatpush1.msra.mxu0 %v326
        %332 = vmatprep.subr.mxu0 0.0
        %333 = vmatpush1.msra.mxu0 0.0
        %334 = vmatprep.subr.mxu0 0.0
        %335 = vmatpush1.msra.mxu0 0.0
        %336 = vmatprep.subr.mxu0 0.0
        %337 = vmatpush1.msra.mxu0 0.0
        %338 = vmatprep.subr.mxu0 0.0
        %339 = vmatpush1.msra.mxu0 0.0
        %340 = vmatprep.subr.mxu0 0.0
        %341 = vmatpush1.msra.mxu0 0.0
        %342 = vmatprep.subr.mxu0 0.0
        %343 = vmatpush1.msra.mxu0 0.0
        %344 = vmatprep.subr.mxu0 0.0
        %345 = vmatpush1.msra.mxu0 0.0
        %346 = vmatprep.subr.mxu0 0.0
        %347 = vmatpush1.msra.mxu0 0.0
        %348 = vmatprep.subr.mxu0 0.0
        %349 = vmatpush1.msra.mxu0 0.0
        %350 = vmatprep.subr.mxu0 0.0
        %351 = vmatpush1.msra.mxu0 0.0
        %352 = vmatprep.subr.mxu0 0.0
        %353 = vmatpush1.msra.mxu0 0.0
        %354 = vmatprep.subr.mxu0 0.0
        %355 = vmatpush1.msra.mxu0 0.0
        %356 = vmatprep.subr.mxu0 0.0
        %357 = vmatpush1.msra.mxu0 0.0
        %358 = vmatprep.subr.mxu0 0.0
        %359 = vmatpush1.msra.mxu0 0.0
        %360 = vmatprep.subr.mxu0 0.0
        %361 = vmatpush1.msra.mxu0 0.0
        %362 = vmatprep.subr.mxu0 0.0
        %363 = vmatpush1.msra.mxu0 0.0
        %364 = vmatprep.subr.mxu0 0.0
        %365 = vmatpush1.msra.mxu0 0.0
        %366 = vmatprep.subr.mxu0 0.0
        %367 = vmatpush1.msra.mxu0 0.0
        %368 = vmatprep.subr.mxu0 0.0
        %369 = vmatpush1.msra.mxu0 0.0
        %370 = vmatprep.subr.mxu0 0.0
        %371 = vmatpush1.msra.mxu0 0.0
        %372 = vmatprep.subr.mxu0 0.0
        %373 = vmatpush1.msra.mxu0 0.0
        %374 = vmatprep.subr.mxu0 0.0
        %375 = vmatpush1.msra.mxu0 0.0
        %376 = vmatprep.subr.mxu0 0.0
        %377 = vmatpush1.msra.mxu0 0.0
        %378 = vmatprep.subr.mxu0 0.0
        %379 = vmatpush1.msra.mxu0 0.0
        %380 = vmatprep.subr.mxu0 0.0
        %381 = vmatpush1.msra.mxu0 0.0
        %382 = vmatprep.subr.mxu0 0.0
        %383 = vmatpush1.msra.mxu0 0.0
        %384 = vmatprep.subr.mxu0 0.0
        %385 = vmatpush1.msra.mxu0 0.0
        %386 = vmatprep.subr.mxu0 0.0
        %387 = vmatpush1.msra.mxu0 0.0
        %388 = vmatprep.subr.mxu0 0.0
        %389 = vmatpush1.msra.mxu0 0.0
        %390 = vmatprep.subr.mxu0 0.0
        %391 = vmatpush1.msra.mxu0 0.0
        %392 = vmatprep.mubr.f32.mxu0 0.0
        %393 = vmatmul.mubr.f32.gmra.mrb[0].mxu0 %v277
        %v394 = vpop.f32.mrb[0].mxu0
        %v395 = vadd.f32 0.0, %v394
        %v396 = vpop.f32.mrb[0].mxu0
        %397 = vmatprep.mubr.f32.mxu0 0.0
        %398 = vmatmul.mubr.f32.gmra.mrb[0].mxu0 %v280
        %v399 = vpop.f32.mrb[0].mxu0
        %v400 = vadd.f32 0.0, %v399
        %v401 = vpop.f32.mrb[0].mxu0
        %402 = vmatprep.mubr.f32.mxu0 0.0
        %403 = vmatmul.mubr.f32.gmra.mrb[0].mxu0 %v283
        %v404 = vpop.f32.mrb[0].mxu0
        %v405 = vadd.f32 0.0, %v404
        %v406 = vpop.f32.mrb[0].mxu0
        %407 = vmatprep.mubr.f32.mxu0 0.0
        %408 = vmatmul.mubr.f32.gmra.mrb[0].mxu0 %v286
        %v409 = vpop.f32.mrb[0].mxu0
        %v410 = vadd.f32 0.0, %v409
        %v411 = vpop.f32.mrb[0].mxu0
        %412 = vmatprep.mubr.f32.mxu0 0.0
        %413 = vmatmul.mubr.f32.gmra.mrb[0].mxu0 %v289
        %v414 = vpop.f32.mrb[0].mxu0
        %v415 = vadd.f32 0.0, %v414
        %v416 = vpop.f32.mrb[0].mxu0
        %417 = vmatprep.mubr.f32.mxu0 0.0
        %418 = vmatmul.mubr.f32.gmra.mrb[0].mxu0 %v292
        %v419 = vpop.f32.mrb[0].mxu0
        %v420 = vadd.f32 0.0, %v419
        %v421 = vpop.f32.mrb[0].mxu0
        %422 = vmatprep.mubr.f32.mxu0 0.0
        %423 = vmatmul.mubr.f32.gmra.mrb[0].mxu0 %v295
        %v424 = vpop.f32.mrb[0].mxu0
        %v425 = vadd.f32 0.0, %v424
        %v426 = vpop.f32.mrb[0].mxu0
        %427 = vmatprep.mubr.f32.mxu0 0.0
        %428 = vmatmul.mubr.f32.gmra.mrb[0].mxu0 %v298
        %v429 = vpop.f32.mrb[0].mxu0
        %v430 = vadd.f32 0.0, %v429
        %v431 = vpop.f32.mrb[0].mxu0
        %432 = vmatprep.mubr.f32.mxu0 0.0
        %433 = vmatmul.mubr.f32.gmra.mrb[0].mxu0 %v301
        %v434 = vpop.f32.mrb[0].mxu0
        %v435 = vadd.f32 0.0, %v434
        %v436 = vpop.f32.mrb[0].mxu0
        %437 = vmatprep.mubr.f32.mxu0 0.0
        %438 = vmatmul.mubr.f32.gmra.mrb[0].mxu0 %v304
        %v439 = vpop.f32.mrb[0].mxu0
        %v440 = vadd.f32 0.0, %v439
        %v441 = vpop.f32.mrb[0].mxu0
        %442 = vmatprep.mubr.f32.mxu0 0.0
        %443 = vmatmul.mubr.f32.gmra.mrb[0].mxu0 %v307
        %v444 = vpop.f32.mrb[0].mxu0
        %v445 = vadd.f32 0.0, %v444
        %v446 = vpop.f32.mrb[0].mxu0
        %447 = vmatprep.mubr.f32.mxu0 0.0
        %448 = vmatmul.mubr.f32.gmra.mrb[0].mxu0 %v310
        %v449 = vpop.f32.mrb[0].mxu0
        %v450 = vadd.f32 0.0, %v449
        %v451 = vpop.f32.mrb[0].mxu0
        %452 = vmatprep.mubr.f32.mxu0 0.0
        %453 = vmatmul.mubr.f32.gmra.mrb[0].mxu0 %v313
        %v454 = vpop.f32.mrb[0].mxu0
        %v455 = vadd.f32 0.0, %v454
        %v456 = vpop.f32.mrb[0].mxu0
        %457 = vmatprep.mubr.f32.mxu0 0.0
        %458 = vmatmul.mubr.f32.gmra.mrb[0].mxu0 %v316
        %v459 = vpop.f32.mrb[0].mxu0
        %v460 = vadd.f32 0.0, %v459
        %v461 = vpop.f32.mrb[0].mxu0
        %462 = vmatprep.mubr.f32.mxu0 0.0
        %463 = vmatmul.mubr.f32.gmra.mrb[0].mxu0 %v319
        %v464 = vpop.f32.mrb[0].mxu0
        %v465 = vadd.f32 0.0, %v464
        %v466 = vpop.f32.mrb[0].mxu0
        %467 = vmatprep.mubr.f32.mxu0 0.0
        %468 = vmatmul.mubr.f32.gmra.mrb[0].mxu0 %v322
        %v469 = vpop.f32.mrb[0].mxu0
        %v470 = vadd.f32 0.0, %v469
        %v471 = vpop.f32.mrb[0].mxu0
        %472 = vdwg.mxu0
        %473 = vst [vmem:[#allocation2] sm:$0xff] %v395
        %474 = vst [vmem:[#allocation2 + $0x8] sm:$0xff] %v400
        %475 = vst [vmem:[#allocation2 + $0x10] sm:$0xff] %v405
        %476 = vst [vmem:[#allocation2 + $0x18] sm:$0xff] %v410
        %477 = vst [vmem:[#allocation2 + $0x20] sm:$0xff] %v415
        %478 = vst [vmem:[#allocation2 + $0x28] sm:$0xff] %v420
        %479 = vst [vmem:[#allocation2 + $0x30] sm:$0xff] %v425
        %480 = vst [vmem:[#allocation2 + $0x38] sm:$0xff] %v430
        %481 = vst [vmem:[#allocation2 + $0x40] sm:$0xff] %v435
        %482 = vst [vmem:[#allocation2 + $0x48] sm:$0xff] %v440
        %483 = vst [vmem:[#allocation2 + $0x50] sm:$0xff] %v445
        %484 = vst [vmem:[#allocation2 + $0x58] sm:$0xff] %v450
        %485 = vst [vmem:[#allocation2 + $0x60] sm:$0xff] %v455
        %486 = vst [vmem:[#allocation2 + $0x68] sm:$0xff] %v460
        %487 = vst [vmem:[#allocation2 + $0x70] sm:$0xff] %v465
        %488 = vst [vmem:[#allocation2 + $0x78] sm:$0xff] %v470
        %v489 = vld [vmem:[#allocation2] sm:$0xff]
        %v490 = vld [vmem:[#allocation2 + $0x8] sm:$0xff]
        %v491 = vld [vmem:[#allocation2 + $0x10] sm:$0xff]
        %v492 = vld [vmem:[#allocation2 + $0x18] sm:$0xff]
        %v493 = vld [vmem:[#allocation2 + $0x20] sm:$0xff]
        %v494 = vld [vmem:[#allocation2 + $0x28] sm:$0xff]
        %v495 = vld [vmem:[#allocation2 + $0x30] sm:$0xff]
        %v496 = vld [vmem:[#allocation2 + $0x38] sm:$0xff]
        %v497 = vld [vmem:[#allocation2 + $0x40] sm:$0xff]
        %v498 = vld [vmem:[#allocation2 + $0x48] sm:$0xff]
        %v499 = vld [vmem:[#allocation2 + $0x50] sm:$0xff]
        %v500 = vld [vmem:[#allocation2 + $0x58] sm:$0xff]
        %v501 = vld [vmem:[#allocation2 + $0x60] sm:$0xff]
        %v502 = vld [vmem:[#allocation2 + $0x68] sm:$0xff]
        %v503 = vld [vmem:[#allocation2 + $0x70] sm:$0xff]
        %v504 = vld [vmem:[#allocation2 + $0x78] sm:$0xff]
        %v505 = vld [vmem:[%s226 + $0x10] sm:$0xff]
        %v506 = vld [vmem:[%s226 + $0x18] sm:$0xff]
        %v507 = vld [vmem:[%s226 + $0x20] sm:$0xff]
        %v508 = vld [vmem:[%s226 + $0x28] sm:$0xff]
        %v509 = vld [vmem:[%s226 + $0x30] sm:$0xff]
        %v510 = vld [vmem:[%s226 + $0x38] sm:$0xff]
        %v511 = vld [vmem:[%s226 + $0x40] sm:$0xff]
        %v512 = vld [vmem:[%s226 + $0x48] sm:$0xff]
        %v513 = vld [vmem:[%s226 + $0x50] sm:$0xff]
        %v514 = vld [vmem:[%s226 + $0x58] sm:$0xff]
        %v515 = vld [vmem:[%s226 + $0x60] sm:$0xff]
        %v516 = vld [vmem:[%s226 + $0x68] sm:$0xff]
        %v517 = vld [vmem:[%s226 + $0x70] sm:$0xff]
        %v518 = vld [vmem:[%s226 + $0x78] sm:$0xff]
        %v519 = vld [vmem:[%s226 + $0x80] sm:$0xff]
        %v520 = vld [vmem:[%s226 + $0x88] sm:$0xff]
        %s521 = scalar_lea.vmem [#allocation6], 16
        %v522 = vld [vmem:[%s521] sm:$0xff]
        %v523 = vld [vmem:[%s521 + $0x8] sm:$0xf]
        %v525 = vsel %vm275, %v505, 0
        %v528 = vsel %vm275, %v506, 0
        %v531 = vsel %vm275, %v507, 0
        %v534 = vsel %vm275, %v508, 0
        %v537 = vsel %vm275, %v509, 0
        %v540 = vsel %vm275, %v510, 0
        %v543 = vsel %vm275, %v511, 0
        %v546 = vsel %vm275, %v512, 0
        %v549 = vsel %vm275, %v513, 0
        %v552 = vsel %vm275, %v514, 0
        %v555 = vsel %vm275, %v515, 0
        %v558 = vsel %vm275, %v516, 0
        %v561 = vsel %vm275, %v517, 0
        %v564 = vsel %vm275, %v518, 0
        %v567 = vsel %vm275, %v519, 0
        %v570 = vsel %vm275, %v520, 0
        %v573 = vsel %vm324, %v523, 0
        %575 = vmatprep.subr.mxu0 0.0
        %576 = vmatpush1.msra.mxu0 %v522
        %577 = vmatprep.subr.mxu0 0.0
        %578 = vmatpush1.msra.mxu0 %v573
        %579 = vmatprep.subr.mxu0 0.0
        %580 = vmatpush1.msra.mxu0 0.0
        %581 = vmatprep.subr.mxu0 0.0
        %582 = vmatpush1.msra.mxu0 0.0
        %583 = vmatprep.subr.mxu0 0.0
        %584 = vmatpush1.msra.mxu0 0.0
        %585 = vmatprep.subr.mxu0 0.0
        %586 = vmatpush1.msra.mxu0 0.0
        %587 = vmatprep.subr.mxu0 0.0
        %588 = vmatpush1.msra.mxu0 0.0
        %589 = vmatprep.subr.mxu0 0.0
        %590 = vmatpush1.msra.mxu0 0.0
        %591 = vmatprep.subr.mxu0 0.0
        %592 = vmatpush1.msra.mxu0 0.0
        %593 = vmatprep.subr.mxu0 0.0
        %594 = vmatpush1.msra.mxu0 0.0
        %595 = vmatprep.subr.mxu0 0.0
        %596 = vmatpush1.msra.mxu0 0.0
        %597 = vmatprep.subr.mxu0 0.0
        %598 = vmatpush1.msra.mxu0 0.0
        %599 = vmatprep.subr.mxu0 0.0
        %600 = vmatpush1.msra.mxu0 0.0
        %601 = vmatprep.subr.mxu0 0.0
        %602 = vmatpush1.msra.mxu0 0.0
        %603 = vmatprep.subr.mxu0 0.0
        %604 = vmatpush1.msra.mxu0 0.0
        %605 = vmatprep.subr.mxu0 0.0
        %606 = vmatpush1.msra.mxu0 0.0
        %607 = vmatprep.subr.mxu0 0.0
        %608 = vmatpush1.msra.mxu0 0.0
        %609 = vmatprep.subr.mxu0 0.0
        %610 = vmatpush1.msra.mxu0 0.0
        %611 = vmatprep.subr.mxu0 0.0
        %612 = vmatpush1.msra.mxu0 0.0
        %613 = vmatprep.subr.mxu0 0.0
        %614 = vmatpush1.msra.mxu0 0.0
        %615 = vmatprep.subr.mxu0 0.0
        %616 = vmatpush1.msra.mxu0 0.0
        %617 = vmatprep.subr.mxu0 0.0
        %618 = vmatpush1.msra.mxu0 0.0
        %619 = vmatprep.subr.mxu0 0.0
        %620 = vmatpush1.msra.mxu0 0.0
        %621 = vmatprep.subr.mxu0 0.0
        %622 = vmatpush1.msra.mxu0 0.0
        %623 = vmatprep.subr.mxu0 0.0
        %624 = vmatpush1.msra.mxu0 0.0
        %625 = vmatprep.subr.mxu0 0.0
        %626 = vmatpush1.msra.mxu0 0.0
        %627 = vmatprep.subr.mxu0 0.0
        %628 = vmatpush1.msra.mxu0 0.0
        %629 = vmatprep.subr.mxu0 0.0
        %630 = vmatpush1.msra.mxu0 0.0
        %631 = vmatprep.subr.mxu0 0.0
        %632 = vmatpush1.msra.mxu0 0.0
        %633 = vmatprep.subr.mxu0 0.0
        %634 = vmatpush1.msra.mxu0 0.0
        %635 = vmatprep.subr.mxu0 0.0
        %636 = vmatpush1.msra.mxu0 0.0
        %637 = vmatprep.subr.mxu0 0.0
        %638 = vmatpush1.msra.mxu0 0.0
        %639 = vmatprep.mubr.f32.mxu0 0.0
        %640 = vmatmul.mubr.f32.gmra.mrb[0].mxu0 %v525
        %v641 = vpop.f32.mrb[0].mxu0
        %v642 = vadd.f32 0.0, %v641
        %v643 = vpop.f32.mrb[0].mxu0
        %644 = vmatprep.mubr.f32.mxu0 0.0
        %645 = vmatmul.mubr.f32.gmra.mrb[0].mxu0 %v528
        %v646 = vpop.f32.mrb[0].mxu0
        %v647 = vadd.f32 0.0, %v646
        %v648 = vpop.f32.mrb[0].mxu0
        %649 = vmatprep.mubr.f32.mxu0 0.0
        %650 = vmatmul.mubr.f32.gmra.mrb[0].mxu0 %v531
        %v651 = vpop.f32.mrb[0].mxu0
        %v652 = vadd.f32 0.0, %v651
        %v653 = vpop.f32.mrb[0].mxu0
        %654 = vmatprep.mubr.f32.mxu0 0.0
        %655 = vmatmul.mubr.f32.gmra.mrb[0].mxu0 %v534
        %v656 = vpop.f32.mrb[0].mxu0
        %v657 = vadd.f32 0.0, %v656
        %v658 = vpop.f32.mrb[0].mxu0
        %659 = vmatprep.mubr.f32.mxu0 0.0
        %660 = vmatmul.mubr.f32.gmra.mrb[0].mxu0 %v537
        %v661 = vpop.f32.mrb[0].mxu0
        %v662 = vadd.f32 0.0, %v661
        %v663 = vpop.f32.mrb[0].mxu0
        %664 = vmatprep.mubr.f32.mxu0 0.0
        %665 = vmatmul.mubr.f32.gmra.mrb[0].mxu0 %v540
        %v666 = vpop.f32.mrb[0].mxu0
        %v667 = vadd.f32 0.0, %v666
        %v668 = vpop.f32.mrb[0].mxu0
        %669 = vmatprep.mubr.f32.mxu0 0.0
        %670 = vmatmul.mubr.f32.gmra.mrb[0].mxu0 %v543
        %v671 = vpop.f32.mrb[0].mxu0
        %v672 = vadd.f32 0.0, %v671
        %v673 = vpop.f32.mrb[0].mxu0
        %674 = vmatprep.mubr.f32.mxu0 0.0
        %675 = vmatmul.mubr.f32.gmra.mrb[0].mxu0 %v546
        %v676 = vpop.f32.mrb[0].mxu0
        %v677 = vadd.f32 0.0, %v676
        %v678 = vpop.f32.mrb[0].mxu0
        %679 = vmatprep.mubr.f32.mxu0 0.0
        %680 = vmatmul.mubr.f32.gmra.mrb[0].mxu0 %v549
        %v681 = vpop.f32.mrb[0].mxu0
        %v682 = vadd.f32 0.0, %v681
        %v683 = vpop.f32.mrb[0].mxu0
        %684 = vmatprep.mubr.f32.mxu0 0.0
        %685 = vmatmul.mubr.f32.gmra.mrb[0].mxu0 %v552
        %v686 = vpop.f32.mrb[0].mxu0
        %v687 = vadd.f32 0.0, %v686
        %v688 = vpop.f32.mrb[0].mxu0
        %689 = vmatprep.mubr.f32.mxu0 0.0
        %690 = vmatmul.mubr.f32.gmra.mrb[0].mxu0 %v555
        %v691 = vpop.f32.mrb[0].mxu0
        %v692 = vadd.f32 0.0, %v691
        %v693 = vpop.f32.mrb[0].mxu0
        %694 = vmatprep.mubr.f32.mxu0 0.0
        %695 = vmatmul.mubr.f32.gmra.mrb[0].mxu0 %v558
        %v696 = vpop.f32.mrb[0].mxu0
        %v697 = vadd.f32 0.0, %v696
        %v698 = vpop.f32.mrb[0].mxu0
        %699 = vmatprep.mubr.f32.mxu0 0.0
        %700 = vmatmul.mubr.f32.gmra.mrb[0].mxu0 %v561
        %v701 = vpop.f32.mrb[0].mxu0
        %v702 = vadd.f32 0.0, %v701
        %v703 = vpop.f32.mrb[0].mxu0
        %704 = vmatprep.mubr.f32.mxu0 0.0
        %705 = vmatmul.mubr.f32.gmra.mrb[0].mxu0 %v564
        %v706 = vpop.f32.mrb[0].mxu0
        %v707 = vadd.f32 0.0, %v706
        %v708 = vpop.f32.mrb[0].mxu0
        %709 = vmatprep.mubr.f32.mxu0 0.0
        %710 = vmatmul.mubr.f32.gmra.mrb[0].mxu0 %v567
        %v711 = vpop.f32.mrb[0].mxu0
        %v712 = vadd.f32 0.0, %v711
        %v713 = vpop.f32.mrb[0].mxu0
        %714 = vmatprep.mubr.f32.mxu0 0.0
        %715 = vmatmul.mubr.f32.gmra.mrb[0].mxu0 %v570
        %v716 = vpop.f32.mrb[0].mxu0
        %v717 = vadd.f32 0.0, %v716
        %v718 = vpop.f32.mrb[0].mxu0
        %719 = vdwg.mxu0
        %v720 = vadd.f32 %v489, %v642
        %v721 = vadd.f32 %v490, %v647
        %v722 = vadd.f32 %v491, %v652
        %v723 = vadd.f32 %v492, %v657
        %v724 = vadd.f32 %v493, %v662
        %v725 = vadd.f32 %v494, %v667
        %v726 = vadd.f32 %v495, %v672
        %v727 = vadd.f32 %v496, %v677
        %v728 = vadd.f32 %v497, %v682
        %v729 = vadd.f32 %v498, %v687
        %v730 = vadd.f32 %v499, %v692
        %v731 = vadd.f32 %v500, %v697
        %v732 = vadd.f32 %v501, %v702
        %v733 = vadd.f32 %v502, %v707
        %v734 = vadd.f32 %v503, %v712
        %v735 = vadd.f32 %v504, %v717
        %736 = vst [vmem:[#allocation2] sm:$0xff] %v720
        %737 = vst [vmem:[#allocation2 + $0x8] sm:$0xff] %v721
        %738 = vst [vmem:[#allocation2 + $0x10] sm:$0xff] %v722
        %739 = vst [vmem:[#allocation2 + $0x18] sm:$0xff] %v723
        %740 = vst [vmem:[#allocation2 + $0x20] sm:$0xff] %v724
        %741 = vst [vmem:[#allocation2 + $0x28] sm:$0xff] %v725
        %742 = vst [vmem:[#allocation2 + $0x30] sm:$0xff] %v726
        %743 = vst [vmem:[#allocation2 + $0x38] sm:$0xff] %v727
        %744 = vst [vmem:[#allocation2 + $0x40] sm:$0xff] %v728
        %745 = vst [vmem:[#allocation2 + $0x48] sm:$0xff] %v729
        %746 = vst [vmem:[#allocation2 + $0x50] sm:$0xff] %v730
        %747 = vst [vmem:[#allocation2 + $0x58] sm:$0xff] %v731
        %748 = vst [vmem:[#allocation2 + $0x60] sm:$0xff] %v732
        %749 = vst [vmem:[#allocation2 + $0x68] sm:$0xff] %v733
        %750 = vst [vmem:[#allocation2 + $0x70] sm:$0xff] %v734
        %751 = vst [vmem:[#allocation2 + $0x78] sm:$0xff] %v735
        %v752 = vld [vmem:[#allocation2] sm:$0xff]
        %v753 = vld [vmem:[#allocation2 + $0x8] sm:$0xff]
        %v754 = vld [vmem:[#allocation2 + $0x10] sm:$0xff]
        %v755 = vld [vmem:[#allocation2 + $0x18] sm:$0xff]
        %v756 = vld [vmem:[#allocation2 + $0x20] sm:$0xff]
        %v757 = vld [vmem:[#allocation2 + $0x28] sm:$0xff]
        %v758 = vld [vmem:[#allocation2 + $0x30] sm:$0xff]
        %v759 = vld [vmem:[#allocation2 + $0x38] sm:$0xff]
        %v760 = vld [vmem:[#allocation2 + $0x40] sm:$0xff]
        %v761 = vld [vmem:[#allocation2 + $0x48] sm:$0xff]
        %v762 = vld [vmem:[#allocation2 + $0x50] sm:$0xff]
        %v763 = vld [vmem:[#allocation2 + $0x58] sm:$0xff]
        %v764 = vld [vmem:[#allocation2 + $0x60] sm:$0xff]
        %v765 = vld [vmem:[#allocation2 + $0x68] sm:$0xff]
        %v766 = vld [vmem:[#allocation2 + $0x70] sm:$0xff]
        %v767 = vld [vmem:[#allocation2 + $0x78] sm:$0xff]
        %v768 = vld [vmem:[%s226 + $0x20] sm:$0xff]
        %v769 = vld [vmem:[%s226 + $0x28] sm:$0xff]
        %v770 = vld [vmem:[%s226 + $0x30] sm:$0xff]
        %v771 = vld [vmem:[%s226 + $0x38] sm:$0xff]
        %v772 = vld [vmem:[%s226 + $0x40] sm:$0xff]
        %v773 = vld [vmem:[%s226 + $0x48] sm:$0xff]
        %v774 = vld [vmem:[%s226 + $0x50] sm:$0xff]
        %v775 = vld [vmem:[%s226 + $0x58] sm:$0xff]
        %v776 = vld [vmem:[%s226 + $0x60] sm:$0xff]
        %v777 = vld [vmem:[%s226 + $0x68] sm:$0xff]
        %v778 = vld [vmem:[%s226 + $0x70] sm:$0xff]
        %v779 = vld [vmem:[%s226 + $0x78] sm:$0xff]
        %v780 = vld [vmem:[%s226 + $0x80] sm:$0xff]
        %v781 = vld [vmem:[%s226 + $0x88] sm:$0xff]
        %v782 = vld [vmem:[%s226 + $0x90] sm:$0xff]
        %v783 = vld [vmem:[%s226 + $0x98] sm:$0xff]
        %s784 = scalar_lea.vmem [#allocation6], 32
        %v785 = vld [vmem:[%s784] sm:$0xff]
        %v786 = vld [vmem:[%s784 + $0x8] sm:$0xf]
        %v788 = vsel %vm275, %v768, 0
        %v791 = vsel %vm275, %v769, 0
        %v794 = vsel %vm275, %v770, 0
        %v797 = vsel %vm275, %v771, 0
        %v800 = vsel %vm275, %v772, 0
        %v803 = vsel %vm275, %v773, 0
        %v806 = vsel %vm275, %v774, 0
        %v809 = vsel %vm275, %v775, 0
        %v812 = vsel %vm275, %v776, 0
        %v815 = vsel %vm275, %v777, 0
        %v818 = vsel %vm275, %v778, 0
        %v821 = vsel %vm275, %v779, 0
        %v824 = vsel %vm275, %v780, 0
        %v827 = vsel %vm275, %v781, 0
        %v830 = vsel %vm275, %v782, 0
        %v833 = vsel %vm275, %v783, 0
        %v836 = vsel %vm324, %v786, 0
        %838 = vmatprep.subr.mxu0 0.0
        %839 = vmatpush1.msra.mxu0 %v785
        %840 = vmatprep.subr.mxu0 0.0
        %841 = vmatpush1.msra.mxu0 %v836
        %842 = vmatprep.subr.mxu0 0.0
        %843 = vmatpush1.msra.mxu0 0.0
        %844 = vmatprep.subr.mxu0 0.0
        %845 = vmatpush1.msra.mxu0 0.0
        %846 = vmatprep.subr.mxu0 0.0
        %847 = vmatpush1.msra.mxu0 0.0
        %848 = vmatprep.subr.mxu0 0.0
        %849 = vmatpush1.msra.mxu0 0.0
        %850 = vmatprep.subr.mxu0 0.0
        %851 = vmatpush1.msra.mxu0 0.0
        %852 = vmatprep.subr.mxu0 0.0
        %853 = vmatpush1.msra.mxu0 0.0
        %854 = vmatprep.subr.mxu0 0.0
        %855 = vmatpush1.msra.mxu0 0.0
        %856 = vmatprep.subr.mxu0 0.0
        %857 = vmatpush1.msra.mxu0 0.0
        %858 = vmatprep.subr.mxu0 0.0
        %859 = vmatpush1.msra.mxu0 0.0
        %860 = vmatprep.subr.mxu0 0.0
        %861 = vmatpush1.msra.mxu0 0.0
        %862 = vmatprep.subr.mxu0 0.0
        %863 = vmatpush1.msra.mxu0 0.0
        %864 = vmatprep.subr.mxu0 0.0
        %865 = vmatpush1.msra.mxu0 0.0
        %866 = vmatprep.subr.mxu0 0.0
        %867 = vmatpush1.msra.mxu0 0.0
        %868 = vmatprep.subr.mxu0 0.0
        %869 = vmatpush1.msra.mxu0 0.0
        %870 = vmatprep.subr.mxu0 0.0
        %871 = vmatpush1.msra.mxu0 0.0
        %872 = vmatprep.subr.mxu0 0.0
        %873 = vmatpush1.msra.mxu0 0.0
        %874 = vmatprep.subr.mxu0 0.0
        %875 = vmatpush1.msra.mxu0 0.0
        %876 = vmatprep.subr.mxu0 0.0
        %877 = vmatpush1.msra.mxu0 0.0
        %878 = vmatprep.subr.mxu0 0.0
        %879 = vmatpush1.msra.mxu0 0.0
        %880 = vmatprep.subr.mxu0 0.0
        %881 = vmatpush1.msra.mxu0 0.0
        %882 = vmatprep.subr.mxu0 0.0
        %883 = vmatpush1.msra.mxu0 0.0
        %884 = vmatprep.subr.mxu0 0.0
        %885 = vmatpush1.msra.mxu0 0.0
        %886 = vmatprep.subr.mxu0 0.0
        %887 = vmatpush1.msra.mxu0 0.0
        %888 = vmatprep.subr.mxu0 0.0
        %889 = vmatpush1.msra.mxu0 0.0
        %890 = vmatprep.subr.mxu0 0.0
        %891 = vmatpush1.msra.mxu0 0.0
        %892 = vmatprep.subr.mxu0 0.0
        %893 = vmatpush1.msra.mxu0 0.0
        %894 = vmatprep.subr.mxu0 0.0
        %895 = vmatpush1.msra.mxu0 0.0
        %896 = vmatprep.subr.mxu0 0.0
        %897 = vmatpush1.msra.mxu0 0.0
        %898 = vmatprep.subr.mxu0 0.0
        %899 = vmatpush1.msra.mxu0 0.0
        %900 = vmatprep.subr.mxu0 0.0
        %901 = vmatpush1.msra.mxu0 0.0
        %902 = vmatprep.mubr.f32.mxu0 0.0
        %903 = vmatmul.mubr.f32.gmra.mrb[0].mxu0 %v788
        %v904 = vpop.f32.mrb[0].mxu0
        %v905 = vadd.f32 0.0, %v904
        %v906 = vpop.f32.mrb[0].mxu0
        %907 = vmatprep.mubr.f32.mxu0 0.0
        %908 = vmatmul.mubr.f32.gmra.mrb[0].mxu0 %v791
        %v909 = vpop.f32.mrb[0].mxu0
        %v910 = vadd.f32 0.0, %v909
        %v911 = vpop.f32.mrb[0].mxu0
        %912 = vmatprep.mubr.f32.mxu0 0.0
        %913 = vmatmul.mubr.f32.gmra.mrb[0].mxu0 %v794
        %v914 = vpop.f32.mrb[0].mxu0
        %v915 = vadd.f32 0.0, %v914
        %v916 = vpop.f32.mrb[0].mxu0
        %917 = vmatprep.mubr.f32.mxu0 0.0
        %918 = vmatmul.mubr.f32.gmra.mrb[0].mxu0 %v797
        %v919 = vpop.f32.mrb[0].mxu0
        %v920 = vadd.f32 0.0, %v919
        %v921 = vpop.f32.mrb[0].mxu0
        %922 = vmatprep.mubr.f32.mxu0 0.0
        %923 = vmatmul.mubr.f32.gmra.mrb[0].mxu0 %v800
        %v924 = vpop.f32.mrb[0].mxu0
        %v925 = vadd.f32 0.0, %v924
        %v926 = vpop.f32.mrb[0].mxu0
        %927 = vmatprep.mubr.f32.mxu0 0.0
        %928 = vmatmul.mubr.f32.gmra.mrb[0].mxu0 %v803
        %v929 = vpop.f32.mrb[0].mxu0
        %v930 = vadd.f32 0.0, %v929
        %v931 = vpop.f32.mrb[0].mxu0
        %932 = vmatprep.mubr.f32.mxu0 0.0
        %933 = vmatmul.mubr.f32.gmra.mrb[0].mxu0 %v806
        %v934 = vpop.f32.mrb[0].mxu0
        %v935 = vadd.f32 0.0, %v934
        %v936 = vpop.f32.mrb[0].mxu0
        %937 = vmatprep.mubr.f32.mxu0 0.0
        %938 = vmatmul.mubr.f32.gmra.mrb[0].mxu0 %v809
        %v939 = vpop.f32.mrb[0].mxu0
        %v940 = vadd.f32 0.0, %v939
        %v941 = vpop.f32.mrb[0].mxu0
        %942 = vmatprep.mubr.f32.mxu0 0.0
        %943 = vmatmul.mubr.f32.gmra.mrb[0].mxu0 %v812
        %v944 = vpop.f32.mrb[0].mxu0
        %v945 = vadd.f32 0.0, %v944
        %v946 = vpop.f32.mrb[0].mxu0
        %947 = vmatprep.mubr.f32.mxu0 0.0
        %948 = vmatmul.mubr.f32.gmra.mrb[0].mxu0 %v815
        %v949 = vpop.f32.mrb[0].mxu0
        %v950 = vadd.f32 0.0, %v949
        %v951 = vpop.f32.mrb[0].mxu0
        %952 = vmatprep.mubr.f32.mxu0 0.0
        %953 = vmatmul.mubr.f32.gmra.mrb[0].mxu0 %v818
        %v954 = vpop.f32.mrb[0].mxu0
        %v955 = vadd.f32 0.0, %v954
        %v956 = vpop.f32.mrb[0].mxu0
        %957 = vmatprep.mubr.f32.mxu0 0.0
        %958 = vmatmul.mubr.f32.gmra.mrb[0].mxu0 %v821
        %v959 = vpop.f32.mrb[0].mxu0
        %v960 = vadd.f32 0.0, %v959
        %v961 = vpop.f32.mrb[0].mxu0
        %962 = vmatprep.mubr.f32.mxu0 0.0
        %963 = vmatmul.mubr.f32.gmra.mrb[0].mxu0 %v824
        %v964 = vpop.f32.mrb[0].mxu0
        %v965 = vadd.f32 0.0, %v964
        %v966 = vpop.f32.mrb[0].mxu0
        %967 = vmatprep.mubr.f32.mxu0 0.0
        %968 = vmatmul.mubr.f32.gmra.mrb[0].mxu0 %v827
        %v969 = vpop.f32.mrb[0].mxu0
        %v970 = vadd.f32 0.0, %v969
        %v971 = vpop.f32.mrb[0].mxu0
        %972 = vmatprep.mubr.f32.mxu0 0.0
        %973 = vmatmul.mubr.f32.gmra.mrb[0].mxu0 %v830
        %v974 = vpop.f32.mrb[0].mxu0
        %v975 = vadd.f32 0.0, %v974
        %v976 = vpop.f32.mrb[0].mxu0
        %977 = vmatprep.mubr.f32.mxu0 0.0
        %978 = vmatmul.mubr.f32.gmra.mrb[0].mxu0 %v833
        %v979 = vpop.f32.mrb[0].mxu0
        %v980 = vadd.f32 0.0, %v979
        %v981 = vpop.f32.mrb[0].mxu0
        %982 = vdwg.mxu0
        %v983 = vadd.f32 %v752, %v905
        %v984 = vadd.f32 %v753, %v910
        %v985 = vadd.f32 %v754, %v915
        %v986 = vadd.f32 %v755, %v920
        %v987 = vadd.f32 %v756, %v925
        %v988 = vadd.f32 %v757, %v930
        %v989 = vadd.f32 %v758, %v935
        %v990 = vadd.f32 %v759, %v940
        %v991 = vadd.f32 %v760, %v945
        %v992 = vadd.f32 %v761, %v950
        %v993 = vadd.f32 %v762, %v955
        %v994 = vadd.f32 %v763, %v960
        %v995 = vadd.f32 %v764, %v965
        %v996 = vadd.f32 %v765, %v970
        %v997 = vadd.f32 %v766, %v975
        %v998 = vadd.f32 %v767, %v980
        %999 = vst [vmem:[#allocation2] sm:$0xff] %v983
        %1000 = vst [vmem:[#allocation2 + $0x8] sm:$0xff] %v984
        %1001 = vst [vmem:[#allocation2 + $0x10] sm:$0xff] %v985
        %1002 = vst [vmem:[#allocation2 + $0x18] sm:$0xff] %v986
        %1003 = vst [vmem:[#allocation2 + $0x20] sm:$0xff] %v987
        %1004 = vst [vmem:[#allocation2 + $0x28] sm:$0xff] %v988
        %1005 = vst [vmem:[#allocation2 + $0x30] sm:$0xff] %v989
        %1006 = vst [vmem:[#allocation2 + $0x38] sm:$0xff] %v990
        %1007 = vst [vmem:[#allocation2 + $0x40] sm:$0xff] %v991
        %1008 = vst [vmem:[#allocation2 + $0x48] sm:$0xff] %v992
        %1009 = vst [vmem:[#allocation2 + $0x50] sm:$0xff] %v993
        %1010 = vst [vmem:[#allocation2 + $0x58] sm:$0xff] %v994
        %1011 = vst [vmem:[#allocation2 + $0x60] sm:$0xff] %v995
        %1012 = vst [vmem:[#allocation2 + $0x68] sm:$0xff] %v996
        %1013 = vst [vmem:[#allocation2 + $0x70] sm:$0xff] %v997
        %1014 = vst [vmem:[#allocation2 + $0x78] sm:$0xff] %v998
        %v1015 = vld [vmem:[#allocation2] sm:$0xff]
        %v1016 = vld [vmem:[#allocation2 + $0x8] sm:$0xff]
        %v1017 = vld [vmem:[#allocation2 + $0x10] sm:$0xff]
        %v1018 = vld [vmem:[#allocation2 + $0x18] sm:$0xff]
        %v1019 = vld [vmem:[#allocation2 + $0x20] sm:$0xff]
        %v1020 = vld [vmem:[#allocation2 + $0x28] sm:$0xff]
        %v1021 = vld [vmem:[#allocation2 + $0x30] sm:$0xff]
        %v1022 = vld [vmem:[#allocation2 + $0x38] sm:$0xff]
        %v1023 = vld [vmem:[#allocation2 + $0x40] sm:$0xff]
        %v1024 = vld [vmem:[#allocation2 + $0x48] sm:$0xff]
        %v1025 = vld [vmem:[#allocation2 + $0x50] sm:$0xff]
        %v1026 = vld [vmem:[#allocation2 + $0x58] sm:$0xff]
        %v1027 = vld [vmem:[#allocation2 + $0x60] sm:$0xff]
        %v1028 = vld [vmem:[#allocation2 + $0x68] sm:$0xff]
        %v1029 = vld [vmem:[#allocation2 + $0x70] sm:$0xff]
        %v1030 = vld [vmem:[#allocation2 + $0x78] sm:$0xff]
        %v1031 = vld [vmem:[#allocation8] sm:$0x1]
        %v1033 = vlaneseq
        %v1034 = vshrl.u32 %v1033, 7
        %v1035 = vsub.s32 0, %v1034
        %v1036 = vrot.slane %v1031, %v1035
        %v1038 = vadd.f32 %v1015, %v1036
        %v1039 = vadd.f32 %v1016, %v1036
        %v1040 = vadd.f32 %v1017, %v1036
        %v1041 = vadd.f32 %v1018, %v1036
        %v1042 = vadd.f32 %v1019, %v1036
        %v1043 = vadd.f32 %v1020, %v1036
        %v1044 = vadd.f32 %v1021, %v1036
        %v1045 = vadd.f32 %v1022, %v1036
        %v1046 = vadd.f32 %v1023, %v1036
        %v1047 = vadd.f32 %v1024, %v1036
        %v1048 = vadd.f32 %v1025, %v1036
        %v1049 = vadd.f32 %v1026, %v1036
        %v1050 = vadd.f32 %v1027, %v1036
        %v1051 = vadd.f32 %v1028, %v1036
        %v1052 = vadd.f32 %v1029, %v1036
        %v1053 = vadd.f32 %v1030, %v1036
        %v1054 = vmax.f32 %v1038, 0.0
        %v1055 = vmax.f32 %v1039, 0.0
        %v1056 = vmax.f32 %v1040, 0.0
        %v1057 = vmax.f32 %v1041, 0.0
        %v1058 = vmax.f32 %v1042, 0.0
        %v1059 = vmax.f32 %v1043, 0.0
        %v1060 = vmax.f32 %v1044, 0.0
        %v1061 = vmax.f32 %v1045, 0.0
        %v1062 = vmax.f32 %v1046, 0.0
        %v1063 = vmax.f32 %v1047, 0.0
        %v1064 = vmax.f32 %v1048, 0.0
        %v1065 = vmax.f32 %v1049, 0.0
        %v1066 = vmax.f32 %v1050, 0.0
        %v1067 = vmax.f32 %v1051, 0.0
        %v1068 = vmax.f32 %v1052, 0.0
        %v1069 = vmax.f32 %v1053, 0.0
        %1070 = vst [vmem:[%s256] sm:$0xff] %v1054
        %1071 = vst [vmem:[%s256 + $0x8] sm:$0xff] %v1055
        %1072 = vst [vmem:[%s256 + $0x10] sm:$0xff] %v1056
        %1073 = vst [vmem:[%s256 + $0x18] sm:$0xff] %v1057
        %1074 = vst [vmem:[%s256 + $0x20] sm:$0xff] %v1058
        %1075 = vst [vmem:[%s256 + $0x28] sm:$0xff] %v1059
        %1076 = vst [vmem:[%s256 + $0x30] sm:$0xff] %v1060
        %1077 = vst [vmem:[%s256 + $0x38] sm:$0xff] %v1061
        %1078 = vst [vmem:[%s256 + $0x40] sm:$0xff] %v1062
        %1079 = vst [vmem:[%s256 + $0x48] sm:$0xff] %v1063
        %1080 = vst [vmem:[%s256 + $0x50] sm:$0xff] %v1064
        %1081 = vst [vmem:[%s256 + $0x58] sm:$0xff] %v1065
        %1082 = vst [vmem:[%s256 + $0x60] sm:$0xff] %v1066
        %1083 = vst [vmem:[%s256 + $0x68] sm:$0xff] %v1067
        %1084 = vst [vmem:[%s256 + $0x70] sm:$0xff] %v1068
        %1085 = vst [vmem:[%s256 + $0x78] sm:$0xff] %v1069
        %s1086 = sand.u32 %s132, 1
        %s1087 = scalar_lea.sflag [#allocation5], %s1086
        %s1088 = sand.u32 %s132, 1
        %s1089 = smul.addr %s1088, 128
        %s1090 = scalar_lea.vmem [#allocation9], %s1089
        // Predicated region
        $region45: #{_basic_conv_impl.1} parent=31 // pred_check
          %p1091 = pneg %p142
        $region46: #{_basic_conv_impl.1} parent=31 // pred_check_branch
          %1093 = sbr.rel (%p1091) target = $region48
        $region47: #{_basic_conv_impl.1} parent=31 // pred_region
          %s1095 = ssub.s32 2048, 2048
          %1096 = vsyncadd %s1087, %s1095
          %s1097 = smul.addr %s27, 16
          %s1098 = sadd.s32 %s28, %s1097
          %s1099 = smul.addr %s26, 32
          %s1100 = sadd.s32 %s1098, %s1099
          %s1101 = smul.addr %s1100, 128
          %s1102 = scalar_lea.hbm %s3, %s1101
          %s1103 = sshll.u32 %s1090, 4
          %s1104 = int_to_ptr.vmem [resolvable:$true] %s1103
          %1109 = dma.vmem_to_hbm [thread:$0]  %s1104, 2048, %s1102, %s1087, 128, 128, 8
        $region48: #{_basic_conv_impl.1} parent=31 // pred_fallthru
          _
      $region32: #{_basic_conv_impl.1} parent=5 // pred_fallthru
        _
      %p1110 = scmp.le.s32.totalorder 2, %s16
      // Predicated region
      $region49: #{_basic_conv_impl.1} parent=5 // pred_check
        %p1111 = pneg %p1110
      $region50: #{_basic_conv_impl.1} parent=5 // pred_check_branch
        %1113 = sbr.rel (%p1111) target = $region52
      $region51: #{_basic_conv_impl.1} parent=5 // pred_region
        %s1114 = ssub.s32 %s16, 2
        // Predicated region
        $region53: #{_basic_conv_impl.1} parent=51 // pred_check
          %p1115 = pneg %p148
        $region54: #{_basic_conv_impl.1} parent=51 // pred_check_branch
          %1117 = sbr.rel (%p1115) target = $region56
        $region55: #{_basic_conv_impl.1} parent=51 // pred_region
          %s1118 = sand.u32 %s133, 1
          %s1119 = scalar_lea.sflag [#allocation5], %s1118
          %s1120 = sand.u32 %s133, 1
          %s1121 = smul.addr %s1120, 128
          %s1122 = scalar_lea.vmem [#allocation9], %s1121
          %1123 = dma.done %s1119, 2048
        $region56: #{_basic_conv_impl.1} parent=51 // pred_fallthru
          _
      $region52: #{_basic_conv_impl.1} parent=5 // pred_fallthru
        _
    $region6: #{_basic_conv_impl.1} parent=1 // loop_footer
      %s20 = sadd.s32 1, %s16
    $region7: #{_basic_conv_impl.1} parent=1 // loop_footer_branch
      %15 = sbr.rel target = $region3
    $region8: #{_basic_conv_impl.1} parent=1 // loop_exit
      _
    %1124 = vsyncpa [#allocation4], 1
    %s1125 = scalar_lea.sflag [#allocation4], 1
    %1126 = vsyncpa %s1125, 1
    %1127 = vsyncpa [#allocation7], 1
    %1128 = vsyncpa [#allocation5], 1
    %s1129 = scalar_lea.sflag [#allocation5], 1
    %1130 = vsyncpa %s1129, 1

</llo_original>
